<compile_context>
chip_gen: v7x
topology: tpu7x:2x2x1
jax: 0.10.0
libtpu: 0.0.40
codegen_flags: <defaults>
</compile_context>

<pallas_src>
import functools

import jax
import jax.numpy as jnp
from jax import lax
from jax.experimental import pallas as pl
from jax.experimental.pallas import tpu as pltpu

LANE = 128
SUBLANE = 8
# ~4 MiB input block per grid step; 8 MiB double-buffered fits the default
# scoped-VMEM budget on v5e (16 MiB), v6e (32 MiB) and v7x (32 MiB).
TARGET_BLOCK_BYTES = 4 * 1024 * 1024


def _round_up(x, m):
    return ((x + m - 1) // m) * m


def _pick_chunk_rows(tile_rows):
    """Largest divisor of tile_rows in {512,...,8}: inner-loop chunk size so f32
    temporaries stay chunk-sized (<=256 KiB) instead of block-sized."""
    for c in (512, 256, 128, 64, 32, 16, 8):
        if tile_rows % c == 0:
            return c
    return tile_rows


def _block_partial(x_ref, *, eps, tile_rows, chunk_rows, valid_rows):
    """(SUBLANE, LANE) f32 partial of sum(x*log(x+eps)) over one (tile_rows, LANE) block.

    If valid_rows is not None, tile-local rows >= valid_rows are zeroed *before*
    the log, so unspecified data in a partial trailing block never produces NaN.
    """
    num_chunks = tile_rows // chunk_rows

    def body(c, acc):
        start = pl.multiple_of(c * chunk_rows, chunk_rows)
        x = x_ref[pl.ds(start, chunk_rows), :].astype(jnp.float32)
        if valid_rows is not None:
            row = lax.broadcasted_iota(jnp.int32, (chunk_rows, LANE), 0) + c * chunk_rows
            x = jnp.where(row < valid_rows, x, 0.0)   # 0*log(eps) == -0.0, no NaN
        t = x * jnp.log(x + eps)                      # EUP log + VPU mul hot path
        # Pure-VPU sublane-group adds -> (SUBLANE, LANE); no per-chunk XLU reduce.
        return acc + jnp.sum(t.reshape(chunk_rows // SUBLANE, SUBLANE, LANE), axis=0)

    return lax.fori_loop(0, num_chunks, body,
                         jnp.zeros((SUBLANE, LANE), jnp.float32))


def _entropy_partial_kernel(x_ref, o_ref, *, eps, tile_rows, chunk_rows,
                            valid_rows_last, need_mask):
    if need_mask:
        last = pl.num_programs(0) - 1

        @pl.when(pl.program_id(0) != last)
        def _():
            o_ref[0] = _block_partial(x_ref, eps=eps, tile_rows=tile_rows,
                                      chunk_rows=chunk_rows, valid_rows=None)

        @pl.when(pl.program_id(0) == last)
        def _():
            o_ref[0] = _block_partial(x_ref, eps=eps, tile_rows=tile_rows,
                                      chunk_rows=chunk_rows,
                                      valid_rows=valid_rows_last)
    else:
        o_ref[0] = _block_partial(x_ref, eps=eps, tile_rows=tile_rows,
                                  chunk_rows=chunk_rows, valid_rows=None)


def entropy_loss(x, eps=1e-12, tile_rows=None):
    """x: (N, C, H, W). Returns scalar f32 = mean_{N,H,W}( -sum_C x*log(x+eps) )."""
    n, c, h, w = x.shape
    count = n * h * w                     # denominator of the mean (after channel-sum)
    total = n * c * h * w
    itemsize = int(jnp.dtype(x.dtype).itemsize)
    eps = float(eps)

    flat = x.reshape(-1)                  # bitcast for a contiguous NCHW tensor

    # Minimal sublane multiple so the BlockSpec respects packed-dtype tiling:
    # f32 -> 8, bf16 -> 16, int8/fp8 -> 32.
    sub_mult = max(SUBLANE, 32 // itemsize)
    align = sub_mult * LANE

    # Lane-aligned prefix goes through the kernel; the tiny (< align-element)
    # tail is summed in plain JAX.  No padded copy of the tensor is made.
    aligned = (total // align) * align
    rows = aligned // LANE                # multiple of sub_mult by construction

    tail_sum = jnp.float32(0.0)
    if aligned < total:
        t = flat[aligned:].astype(jnp.float32)
        tail_sum = jnp.sum(t * jnp.log(t + eps))

    if rows == 0:                         # tensor smaller than one aligned slab
        return (-tail_sum / jnp.float32(count)).astype(jnp.float32)

    x2d = (flat if aligned == total else flat[:aligned]).reshape(rows, LANE)

    # Block size: ~TARGET_BLOCK_BYTES of input per grid step.
    if tile_rows is None:
        tile_rows = TARGET_BLOCK_BYTES // (LANE * itemsize)
    tile_rows = max(sub_mult, (int(tile_rows) // sub_mult) * sub_mult)
    tile_rows = min(tile_rows, rows)
    # Keep >= 2 blocks when possible so the "parallel" grid axis can feed both
    # v7x TensorCores.
    if rows >= 2 * sub_mult:
        tile_rows = min(tile_rows, _round_up(pl.cdiv(rows, 2), sub_mult))

    num_tiles = pl.cdiv(rows, tile_rows)
    valid_rows_last = rows - (num_tiles - 1) * tile_rows
    need_mask = valid_rows_last != tile_rows
    chunk_rows = _pick_chunk_rows(tile_rows)

    kernel = functools.partial(
        _entropy_partial_kernel,
        eps=eps,
        tile_rows=int(tile_rows),
        chunk_rows=int(chunk_rows),
        valid_rows_last=int(valid_rows_last),
        need_mask=bool(need_mask),
    )

    partials = pl.pallas_call(
        kernel,
        out_shape=jax.ShapeDtypeStruct((num_tiles, SUBLANE, LANE), jnp.float32),
        grid_spec=pltpu.PrefetchScalarGridSpec(
            num_scalar_prefetch=0,
            grid=(num_tiles,),
            in_specs=[pl.BlockSpec((tile_rows, LANE), lambda i: (i, 0))],
            out_specs=pl.BlockSpec((1, SUBLANE, LANE), lambda i: (i, 0, 0)),
        ),
        compiler_params=pltpu.CompilerParams(
            # Independent per-tile partials -> both v7x TCs stream concurrently.
            dimension_semantics=("parallel",),
        ),
        cost_estimate=pl.CostEstimate(
            flops=3 * aligned,
            transcendentals=aligned,
            bytes_accessed=aligned * itemsize + num_tiles * SUBLANE * LANE * 4,
        ),
    )(x2d)

    # Tiny final reduction (num_tiles * 8 * 128 f32) + tail + scale/negate in JAX.
    return (-(jnp.sum(partials) + tail_sum) / jnp.float32(count)).astype(jnp.float32)


def entropy_loss_ref(x, eps=1e-12):
    xf = x.astype(jnp.float32)
    b = xf * jnp.log(xf + eps)
    b = -1.0 * b.sum(axis=1)
    return b.mean()


if __name__ == "__main__":
    key = jax.random.PRNGKey(0)

    # Small NCHW input; positive values (probability-like) as the module implies.
    x = jax.random.uniform(
        key, (2, 4, 16, 16), dtype=jnp.float32, minval=0.0, maxval=1.0
    )
    out = jax.block_until_ready(entropy_loss(x))
    ref = entropy_loss_ref(x)
    assert jnp.allclose(out, ref, rtol=1e-5, atol=1e-5), (out, ref)

    # Ragged shape smaller than one aligned slab: exercises the pure-JAX tail path.
    x2 = jax.random.uniform(
        jax.random.PRNGKey(1), (2, 3, 7, 5), dtype=jnp.float32, minval=0.0, maxval=1.0
    )
    out2 = jax.block_until_ready(entropy_loss(x2))
    ref2 = entropy_loss_ref(x2)
    assert jnp.allclose(out2, ref2, rtol=1e-5, atol=1e-5), (out2, ref2)

    # Shape whose aligned prefix does not divide the tile: exercises the
    # pl.when-gated last-tile mask + JAX tail together.
    x3 = jax.random.uniform(
        jax.random.PRNGKey(2), (2, 5, 24, 24), dtype=jnp.float32, minval=0.0, maxval=1.0
    )
    out3 = jax.block_until_ready(entropy_loss(x3))
    ref3 = entropy_loss_ref(x3)
    assert jnp.allclose(out3, ref3, rtol=1e-5, atol=1e-5), (out3, ref3)

    print("KERNEL_OK")
</pallas_src>

<mosaic_0001>
module attributes {stable_mosaic.version = 11 : i64} {
  func.func @_entropy_partial_kernel(%arg0: i32, %arg1: memref<8x128xf32, #tpu.memory_space<vmem>>, %arg2: memref<1x8x128xf32, #tpu.memory_space<vmem>>) attributes {dimension_semantics = [#tpu.dimension_semantics<parallel>], iteration_bounds = array<i64: 2>, scalar_prefetch = 0 : i64, scratch_operands = 0 : i64, tpu.core_type = #tpu.core_type<tc>, window_params = [{transform_indices = @transform_0, window_bounds = array<i64: 8, 128>}, {transform_indices = @transform_1, window_bounds = array<i64: 1, 8, 128>}]} {
    %cst = arith.constant 0.000000e+00 : f32
    %0 = vector.broadcast %cst : f32 to vector<8x128xf32>
    %c0_i32 = arith.constant 0 : i32
    %c8_i32 = arith.constant 8 : i32
    %1 = arith.muli %c0_i32, %c8_i32 : i32
    %2 = tpu.assume_multiple %1, 8 : i32
    %3 = arith.index_cast %2 : i32 to index
    %c0 = arith.constant 0 : index
    %4 = vector.load %arg1[%3, %c0] : memref<8x128xf32, #tpu.memory_space<vmem>>, vector<8x128xf32>
    %cst_0 = arith.constant 9.99999996E-13 : f32
    %5 = vector.broadcast %cst_0 : f32 to vector<8x128xf32>
    %6 = arith.addf %4, %5 : vector<8x128xf32>
    %7 = math.log %6 : vector<8x128xf32>
    %8 = arith.mulf %4, %7 : vector<8x128xf32>
    %9 = vector.shape_cast %8 : vector<8x128xf32> to vector<1x8x128xf32>
    %cst_1 = arith.constant dense<0.000000e+00> : vector<8x128xf32>
    %10 = vector.multi_reduction <add>, %9, %cst_1 [0] : vector<1x8x128xf32> to vector<8x128xf32>
    %11 = arith.addf %0, %10 : vector<8x128xf32>
    %c1_i32 = arith.constant 1 : i32
    %c0_2 = arith.constant 0 : index
    %c0_3 = arith.constant 0 : index
    %c0_4 = arith.constant 0 : index
    %12 = vector.load %arg2[%c0_2, %c0_3, %c0_4] : memref<1x8x128xf32, #tpu.memory_space<vmem>>, vector<1x8x128xf32>
    %13 = vector.shape_cast %12 : vector<1x8x128xf32> to vector<8x128xf32>
    %14 = vector.shape_cast %11 : vector<8x128xf32> to vector<1x8x128xf32>
    tpu.vector_store %arg2[%c0_2, %c0_3, %c0_4], %14 {strides = array<i32>} : memref<1x8x128xf32, #tpu.memory_space<vmem>>, vector<1x8x128xf32>,
    return
  }
  func.func @transform_0(%arg0: i32) -> (i32, i32) {
    %c0_i32 = arith.constant 0 : i32
    %c0_i32_0 = arith.constant 0 : i32
    return %arg0, %c0_i32 : i32, i32
  }
  func.func @transform_1(%arg0: i32) -> (i32, i32, i32) {
    %c0_i32 = arith.constant 0 : i32
    %c0_i32_0 = arith.constant 0 : i32
    %c0_i32_1 = arith.constant 0 : i32
    return %arg0, %c0_i32, %c0_i32_0 : i32, i32, i32
  }
}

</mosaic_0001>

<llo_original>
// kernel: tpu_custom_call.1
$region0: #{tpu_custom_call.1}
  #allocation0 [shape = 'u32[]', space=smem, size = 0x4, offset = 0x4, fixed_abs, tag = 'smem constant byte address 0x4 - core index']
  #allocation1 [shape = 'u32[144,128]{1,0:T(1,128)}', space=vmem, size = 0x12000, scoped, tag = 'internal scratch']
  %s0 = inlined_call_operand.hbm [shape: f32[16,128], index: 0, kind: input, shape index: {}]
  %s1 = inlined_call_operand.hbm [shape: f32[2,8,128], index: 1, kind: output, shape index: {}]
  %s2 = sld [smem:[#allocation0]]
  $region41: #{tpu_custom_call.1} parent=0
    _
  %s4 = ssub.s32 1, %s2
  %s5 = scalar_select 0, %s4, %s2
  $region1: #{tpu_custom_call.1} parent=0
    #allocation2 [shape = 'u8[8192]{0}', space=vmem, size = 0x2000, scoped, tag = 'input window, operand 0']
    #allocation3 [shape = 's32[2]{0}', space=sflag, size = 0x8, scoped, tag = 'scoped memory for tpu_custom_call.1']
    #allocation4 [shape = 's32[2]{0}', space=sflag, size = 0x8, scoped, tag = 'scoped memory for tpu_custom_call.1']
    #allocation5 [shape = 'u8[8192]{0}', space=vmem, size = 0x2000, scoped, tag = 'output window, operand 0']
    %6 = vsyncpa [#allocation3], 0
    %s7 = scalar_lea.sflag [#allocation3], 1
    %8 = vsyncpa %s7, 0
    %9 = vsyncpa [#allocation4], 0
    %s10 = scalar_lea.sflag [#allocation4], 1
    %11 = vsyncpa %s10, 0
    loop: start=0, step=1, limit=4
    $region2: #{tpu_custom_call.1} parent=1 // loop_pre_header
      _
    $region3: #{tpu_custom_call.1} parent=1 // loop_header
      %s13 = sphi 0, %s17
      %p14 = scmp.ge.s32.totalorder %s13, 4
      %s23 = sphi 0, %s25
      %s26 = sphi 0, %s23
      %s27 = sphi 0, %s26
      %s43 = sphi 0, %s27
      %s49 = sphi 0, %s51
      %s52 = sphi 0, %s49
      %s53 = sphi 0, %s52
      %s69 = sphi 0, %s53
    $region4: #{tpu_custom_call.1} parent=1 // loop_header_branch
      %16 = sbr.rel (%p14) target = $region8
    $region5: #{tpu_custom_call.1} parent=1 // loop_body
      %s18 = ssub.s32 %s13, 1
      %s19 = ssub.s32 %s13, 2
      %s20 = sadd.s32 %s13, 1
      %s21 = ssub.s32 %s13, %s20
      %p22 = scmp.eq.s32.totalorder %s21, 0
      %s24 = sadd.s32 %s23, 1
      %s25 = scalar_select %p22, %s23, %s24
      %p28 = pneg %p22
      %p29 = scmp.eq.s32.totalorder %s13, 1
      %p30 = por %p28, %p29
      %p31 = scmp.ne.s32.totalorder %s23, %s26
      %p32 = scmp.eq.s32.totalorder %s13, 0
      %p33 = por %p31, %p32
      %p34 = scmp.ne.s32.totalorder %s23, %s26
      %p35 = scmp.eq.s32.totalorder %s18, 1
      %p36 = por %p34, %p35
      %p37 = scmp.ne.s32.totalorder %s26, %s27
      %p38 = scmp.eq.s32.totalorder %s18, 0
      %p39 = por %p37, %p38
      %p40 = scmp.ne.s32.totalorder %s26, %s27
      %p41 = scmp.eq.s32.totalorder %s19, 1
      %p42 = por %p40, %p41
      %p44 = scmp.ne.s32.totalorder %s27, %s43
      %p45 = scmp.eq.s32.totalorder %s19, 0
      %p46 = por %p44, %p45
      %s47 = ssub.s32 %s13, %s20
      %p48 = scmp.eq.s32.totalorder %s47, 0
      %s50 = sadd.s32 %s49, 1
      %s51 = scalar_select %p48, %s49, %s50
      %p54 = pneg %p48
      %p55 = scmp.eq.s32.totalorder %s13, 1
      %p56 = por %p54, %p55
      %p57 = scmp.ne.s32.totalorder %s49, %s52
      %p58 = scmp.eq.s32.totalorder %s13, 0
      %p59 = por %p57, %p58
      %p60 = scmp.ne.s32.totalorder %s49, %s52
      %p61 = scmp.eq.s32.totalorder %s18, 1
      %p62 = por %p60, %p61
      %p63 = scmp.ne.s32.totalorder %s52, %s53
      %p64 = scmp.eq.s32.totalorder %s18, 0
      %p65 = por %p63, %p64
      %p66 = scmp.ne.s32.totalorder %s52, %s53
      %p67 = scmp.eq.s32.totalorder %s19, 1
      %p68 = por %p66, %p67
      %p70 = scmp.ne.s32.totalorder %s53, %s69
      %p71 = scmp.eq.s32.totalorder %s19, 0
      %p72 = por %p70, %p71
      %p73 = scmp.le.s32.totalorder 1, %s13
      %p74 = scmp.lt.s32.totalorder %s13, 3
      %p75 = pnand %p73, %p74
      %p76 = pneg %p75
      // Predicated region
      $region9: #{tpu_custom_call.1} parent=5 // pred_check
        _
      $region10: #{tpu_custom_call.1} parent=5 // pred_check_branch
        %78 = sbr.rel (%p75) target = $region12
      $region11: #{tpu_custom_call.1} parent=5 // pred_region
        %s79 = ssub.s32 %s13, 1
      $region12: #{tpu_custom_call.1} parent=5 // pred_fallthru
        _
      %p80 = scmp.lt.s32.totalorder %s13, 2
      // Predicated region
      $region13: #{tpu_custom_call.1} parent=5 // pred_check
        %p81 = pneg %p80
      $region14: #{tpu_custom_call.1} parent=5 // pred_check_branch
        %83 = sbr.rel (%p81) target = $region16
      $region15: #{tpu_custom_call.1} parent=5 // pred_region
        // Predicated region
        $region17: #{tpu_custom_call.1} parent=15 // pred_check
          %p84 = pneg %p33
        $region18: #{tpu_custom_call.1} parent=15 // pred_check_branch
          %86 = sbr.rel (%p84) target = $region20
        $region19: #{tpu_custom_call.1} parent=15 // pred_region
          %s87 = sand.u32 %s23, 1
          %s88 = scalar_lea.sflag [#allocation3], %s87
          %s89 = sand.u32 %s23, 1
          %s90 = smul.addr %s89, 8
          %s91 = scalar_lea.vmem [#allocation2], %s90
          %s93 = ssub.s32 128, 128
          %94 = vsyncadd %s88, %s93
          %s95 = smul.addr %s13, 128
          %s96 = scalar_lea.hbm %s0, %s95
          %s98 = sshll.u32 %s91, 4
          %s99 = int_to_ptr.vmem [resolvable:$true] %s98
          %101 = dma.hbm_to_vmem [thread:$0]  %s96, 128, %s99, %s88
        $region20: #{tpu_custom_call.1} parent=15 // pred_fallthru
          _
      $region16: #{tpu_custom_call.1} parent=5 // pred_fallthru
        _
      %p102 = scmp.le.s32.totalorder 1, %s13
      %p103 = scmp.lt.s32.totalorder %s13, 3
      %p104 = pnand %p102, %p103
      %p105 = pneg %p104
      // Predicated region
      $region21: #{tpu_custom_call.1} parent=5 // pred_check
        _
      $region22: #{tpu_custom_call.1} parent=5 // pred_check_branch
        %107 = sbr.rel (%p104) target = $region24
      $region23: #{tpu_custom_call.1} parent=5 // pred_region
        %s108 = ssub.s32 %s13, 1
        %s109 = sand.u32 %s26, 1
        %s110 = scalar_lea.sflag [#allocation3], %s109
        %s111 = sand.u32 %s26, 1
        %s112 = smul.addr %s111, 8
        %s113 = scalar_lea.vmem [#allocation2], %s112
        // Predicated region
        $region25: #{tpu_custom_call.1} parent=23 // pred_check
          %p114 = pneg %p39
        $region26: #{tpu_custom_call.1} parent=23 // pred_check_branch
          %116 = sbr.rel (%p114) target = $region28
        $region27: #{tpu_custom_call.1} parent=23 // pred_region
          %117 = dma.done %s110, 128
        $region28: #{tpu_custom_call.1} parent=23 // pred_fallthru
          _
        %s118 = sand.u32 %s26, 1
        %s119 = scalar_lea.sflag [#allocation3], %s118
        %s120 = sand.u32 %s26, 1
        %s121 = smul.addr %s120, 8
        %s122 = scalar_lea.vmem [#allocation2], %s121
        %p123 = pneg %p39
        %p124 = pneg %p36
        %p125 = pneg %p65
        %p126 = pneg %p62
        %s127 = sand.u32 %s52, 1
        %s128 = scalar_lea.sflag [#allocation4], %s127
        %s129 = sand.u32 %s52, 1
        %s130 = smul.addr %s129, 8
        %s131 = scalar_lea.vmem [#allocation5], %s130
        %v132 = vld [vmem:[%s113] sm:$0xff]
        %v133 = vadd.f32 %v132, 1e-12
        %v134 = vlog2.pop %v133
        %v135 = vmul.f32 %v134, 0.6931472
        %v136 = vmul.f32 %v132, %v135
        %v137 = vadd.f32 %v136, 0.0
        %v138 = vadd.f32 %v137, 0.0
        %139 = vst [vmem:[%s131] sm:$0xff] %v138
        %s140 = sand.u32 %s52, 1
        %s141 = scalar_lea.sflag [#allocation4], %s140
        %s142 = sand.u32 %s52, 1
        %s143 = smul.addr %s142, 8
        %s144 = scalar_lea.vmem [#allocation5], %s143
        // Predicated region
        $region29: #{tpu_custom_call.1} parent=23 // pred_check
          %p145 = pneg %p62
        $region30: #{tpu_custom_call.1} parent=23 // pred_check_branch
          %147 = sbr.rel (%p145) target = $region32
        $region31: #{tpu_custom_call.1} parent=23 // pred_region
          %s149 = ssub.s32 128, 128
          %150 = vsyncadd %s141, %s149
          %s151 = smul.addr %s18, 128
          %s152 = scalar_lea.hbm %s1, %s151
          %s154 = sshll.u32 %s144, 4
          %s155 = int_to_ptr.vmem [resolvable:$true] %s154
          %157 = dma.vmem_to_hbm [thread:$0]  %s155, 128, %s152, %s141
        $region32: #{tpu_custom_call.1} parent=23 // pred_fallthru
          _
      $region24: #{tpu_custom_call.1} parent=5 // pred_fallthru
        _
      %p158 = scmp.le.s32.totalorder 2, %s13
      // Predicated region
      $region33: #{tpu_custom_call.1} parent=5 // pred_check
        %p159 = pneg %p158
      $region34: #{tpu_custom_call.1} parent=5 // pred_check_branch
        %161 = sbr.rel (%p159) target = $region36
      $region35: #{tpu_custom_call.1} parent=5 // pred_region
        %s162 = ssub.s32 %s13, 2
        // Predicated region
        $region37: #{tpu_custom_call.1} parent=35 // pred_check
          %p163 = pneg %p68
        $region38: #{tpu_custom_call.1} parent=35 // pred_check_branch
          %165 = sbr.rel (%p163) target = $region40
        $region39: #{tpu_custom_call.1} parent=35 // pred_region
          %s166 = sand.u32 %s53, 1
          %s167 = scalar_lea.sflag [#allocation4], %s166
          %s168 = sand.u32 %s53, 1
          %s169 = smul.addr %s168, 8
          %s170 = scalar_lea.vmem [#allocation5], %s169
          %171 = dma.done %s167, 128
        $region40: #{tpu_custom_call.1} parent=35 // pred_fallthru
          _
      $region36: #{tpu_custom_call.1} parent=5 // pred_fallthru
        _
    $region6: #{tpu_custom_call.1} parent=1 // loop_footer
      %s17 = sadd.s32 1, %s13
    $region7: #{tpu_custom_call.1} parent=1 // loop_footer_branch
      %12 = sbr.rel target = $region3
    $region8: #{tpu_custom_call.1} parent=1 // loop_exit
      _
    %172 = vsyncpa [#allocation3], 1
    %s173 = scalar_lea.sflag [#allocation3], 1
    %174 = vsyncpa %s173, 1
    %175 = vsyncpa [#allocation4], 1
    %s176 = scalar_lea.sflag [#allocation4], 1
    %177 = vsyncpa %s176, 1

</llo_original>
